<compile_context>
chip_gen: v7x
topology: tpu7x:2x2x1
jax: 0.10.0
libtpu: 0.0.40
codegen_flags: <defaults>
</compile_context>

<pallas_src>
import math

import jax
import jax.numpy as jnp
from jax import lax
from jax.experimental import pallas as pl
from jax.experimental.pallas import tpu as pltpu


def _make_kernel(nb, h, l):
    """Kernel closure over static tile constants.

    Refs:
      x_ref : (nb*h, l)   f32   nb images stacked along M, channels folded into lanes
      t_ref : (2, 3l, l)  bf16  [conv1 fused dw*pw*bn1-scale, conv2*bn2-scale] Toeplitz
      b_ref : (2, l)      f32   [bn1 bias, conv2-bias + bn2 bias]
      o_ref : (nb*h, l)   f32
    """

    def kernel(x_ref, t_ref, b_ref, o_ref):
        x = x_ref[...]            # single read of the input block (also the residual)
        bias = b_ref[...]

        def im2col(act):
            # (nb*h, l) activation -> (nb*h, 3l) bf16: lanes = [row h-1 | row h | row h+1]
            # per image, with zero rows at each image's top/bottom border (height SAME
            # padding).  Built purely in registers (concats), no VMEM scratch round-trip.
            a = act.astype(jnp.bfloat16)
            z = jnp.zeros((1, l), jnp.bfloat16)
            blocks = []
            for i in range(nb):
                img = a[i * h:(i + 1) * h]
                top = jnp.concatenate([z, img[:-1]], axis=0)     # input row h-1
                bot = jnp.concatenate([img[1:], z], axis=0)      # input row h+1
                blocks.append(jnp.concatenate([top, img, bot], axis=1))
            return blocks[0] if nb == 1 else jnp.concatenate(blocks, axis=0)

        # conv1 (= pointwise . depthwise, bn1 scale folded into the weight) + bias + relu
        y = jnp.dot(im2col(x), t_ref[0], preferred_element_type=jnp.float32)
        y = jnp.maximum(y + bias[0:1, :], 0.0)

        # conv2 (bn2 scale folded into the weight) + bias (conv2 bias + bn2 shift folded)
        out = jnp.dot(im2col(y), t_ref[1], preferred_element_type=jnp.float32)
        out = out + bias[1:2, :]

        # residual add (exact f32 x), lane-dense full-width store
        o_ref[...] = (x + out).astype(o_ref.dtype)

    return kernel


def _toeplitz(w_full, W):
    """(3, 3, Ci, Co) 3x3 conv weight -> (3*W*Ci, W*Co) block-Toeplitz matmul RHS.

    Row index = kh*(W*Ci) + w'*Ci + ci, col index = w*Co + co, value
    w_full[kh, w'-w+1, ci, co] for |w'-w| <= 1 else 0: folds the kw taps and the
    width SAME zero-padding into the weight so each conv is a single im2col matmul.
    """
    _, _, Ci, Co = w_full.shape
    wp = jnp.arange(W)[:, None]          # input column  w'
    wo = jnp.arange(W)[None, :]          # output column w
    kw = wp - wo + 1                     # (W, W)
    valid = (kw >= 0) & (kw <= 2)
    t = w_full[:, jnp.clip(kw, 0, 2)]    # (3, W, W, Ci, Co)
    t = t * valid[None, :, :, None, None].astype(w_full.dtype)
    t = jnp.transpose(t, (0, 1, 3, 2, 4))            # (3, w', ci, w, co)
    return t.reshape(3 * W * Ci, W * Co)


def resblk_spatial_forward(x_nchw, params, eps=1e-5):
    B, C, H, W = x_nchw.shape

    # --- lane-dense layout: pad channels so L = W*Cp is a multiple of 128 -------------
    cstep = 128 // math.gcd(W, 128)
    Cp = ((C + cstep - 1) // cstep) * cstep
    L = W * Cp
    assert L <= 1024, "small W*C specialization (Toeplitz RHS is (3*W*C, W*C))"

    # --- batch blocking: NB images per grid step (folded into matmul M), >=2 steps ----
    n_steps = 2 if B >= 2 else 1                 # keep both v7x TensorCores busy
    NB = -(-B // n_steps)                        # images per step
    NB = min(NB, max(1, 1024 // H))              # cap M rows per step (VMEM / vregs)
    n_steps = -(-B // NB)
    Bp = n_steps * NB
    M = NB * H

    # NCHW -> NHWC -> zero-pad channels & batch -> (n_steps, NB*H, L)
    x = jnp.transpose(x_nchw, (0, 2, 3, 1)).astype(jnp.float32)
    x = jnp.pad(x, ((0, Bp - B), (0, 0), (0, 0), (0, Cp - C)))
    x = x.reshape(n_steps, M, L)

    # --- fold BatchNorm (eval mode, running stats) into scale/bias --------------------
    s1 = params["bn1_gamma"] / jnp.sqrt(params["bn1_var"] + eps)
    b1 = params["bn1_beta"] - params["bn1_mean"] * s1
    s2 = params["bn2_gamma"] / jnp.sqrt(params["bn2_var"] + eps)
    b2 = params["bn2_beta"] + (params["conv2_bias"] - params["bn2_mean"]) * s2

    # conv1 = pointwise(depthwise(x)) fused into one 3x3 weight, bn1 scale folded in:
    #   W1[kh, kw, ci, co] = dw[ci, kh, kw] * pw[co, ci] * s1[co]
    dw = params["dw_weight"][:, 0, :, :]                         # (C, 3, 3)
    pw = params["pw_weight"][:, :, 0, 0]                         # (Co, Ci)
    w1 = jnp.einsum("ikl,oi,o->klio", dw, pw, s1)                # (3, 3, Ci, Co)
    w2 = jnp.einsum("oikl,o->klio", params["conv2_weight"], s2)  # (3, 3, Ci, Co)

    def pad_w(w):  # zero-pad input & output channels up to Cp (padded lanes output 0)
        return jnp.pad(w, ((0, 0), (0, 0), (0, Cp - C), (0, Cp - C)))

    t = jnp.stack([_toeplitz(pad_w(w1), W),
                   _toeplitz(pad_w(w2), W)]).astype(jnp.bfloat16)   # (2, 3L, L)
    bias = jnp.stack([jnp.tile(jnp.pad(b1, (0, Cp - C)), W),
                      jnp.tile(jnp.pad(b2, (0, Cp - C)), W)]
                     ).astype(jnp.float32)                           # (2, L)

    # --- weight buffering & VMEM budget ------------------------------------------------
    weight_bytes = int(t.size) * 2                               # bf16
    weight_kwargs = {}
    if weight_bytes > 4 * 1024 * 1024:
        # Grid-invariant weights: single-buffer only when they are big enough to
        # threaten VMEM (near the W*C cap, v7x has 64 MiB); tiny weights keep default.
        weight_kwargs["pipeline_mode"] = pl.Buffered(1)
    weight_bufs = 1 if weight_kwargs else 2
    vmem_need = (2 * 2 * M * L * 4                 # x / out blocks, double-buffered f32
                 + weight_bufs * weight_bytes      # Toeplitz weights (bf16)
                 + 2 * int(bias.size) * 4          # biases
                 + 4 * M * 3 * L * 4)              # headroom: im2col + activations
    vmem_limit = int(min(64 * 1024 * 1024, max(8 * 1024 * 1024, 4 * vmem_need)))

    out = pl.pallas_call(
        _make_kernel(NB, H, L),
        out_shape=jax.ShapeDtypeStruct((n_steps, M, L), jnp.float32),
        grid_spec=pltpu.PrefetchScalarGridSpec(
            num_scalar_prefetch=0,
            grid=(n_steps,),
            in_specs=[
                pl.BlockSpec((None, M, L), lambda g: (g, 0, 0)),
                pl.BlockSpec((2, 3 * L, L), lambda g: (0, 0, 0), **weight_kwargs),
                pl.BlockSpec((2, L), lambda g: (0, 0)),
            ],
            out_specs=pl.BlockSpec((None, M, L), lambda g: (g, 0, 0)),
        ),
        compiler_params=pltpu.CompilerParams(
            dimension_semantics=("parallel",),
            vmem_limit_bytes=vmem_limit),
    )(x, t, bias)

    # (n_steps, NB*H, L) -> drop batch/channel padding -> NCHW
    out = out.reshape(Bp, H, W, Cp)[:B, :, :, :C]
    return jnp.transpose(out, (0, 3, 1, 2))


def _reference(x_nchw, params, eps=1e-5):
    """Pure-JAX reference (lax.conv, f32, unfused weights) for correctness."""
    C = x_nchw.shape[1]
    dn = ("NCHW", "OIHW", "NCHW")
    y = lax.conv_general_dilated(x_nchw, params["dw_weight"], (1, 1), "SAME",
                                 feature_group_count=C, dimension_numbers=dn)
    y = lax.conv_general_dilated(y, params["pw_weight"], (1, 1), "VALID",
                                 dimension_numbers=dn)
    sc1 = params["bn1_gamma"] / jnp.sqrt(params["bn1_var"] + eps)
    bi1 = params["bn1_beta"] - params["bn1_mean"] * sc1
    y = jnp.maximum(y * sc1.reshape(1, C, 1, 1) + bi1.reshape(1, C, 1, 1), 0.0)
    y = lax.conv_general_dilated(y, params["conv2_weight"], (1, 1), "SAME",
                                 dimension_numbers=dn)
    y = y + params["conv2_bias"].reshape(1, C, 1, 1)
    sc2 = params["bn2_gamma"] / jnp.sqrt(params["bn2_var"] + eps)
    bi2 = params["bn2_beta"] - params["bn2_mean"] * sc2
    y = y * sc2.reshape(1, C, 1, 1) + bi2.reshape(1, C, 1, 1)
    return x_nchw + y


def _make_params(key, C):
    ks = jax.random.split(key, 8)
    return {
        "dw_weight":    0.2 * jax.random.normal(ks[0], (C, 1, 3, 3), jnp.float32),
        "pw_weight":    0.2 * jax.random.normal(ks[1], (C, C, 1, 1), jnp.float32),
        "conv2_weight": 0.2 * jax.random.normal(ks[2], (C, C, 3, 3), jnp.float32),
        "conv2_bias":   0.1 * jax.random.normal(ks[3], (C,), jnp.float32),
        "bn1_gamma": 1.0 + 0.1 * jax.random.normal(ks[4], (C,), jnp.float32),
        "bn1_beta":  0.1 * jax.random.normal(ks[5], (C,), jnp.float32),
        "bn1_mean":  jnp.zeros((C,), jnp.float32),
        "bn1_var":   jnp.ones((C,), jnp.float32),
        "bn2_gamma": 1.0 + 0.1 * jax.random.normal(ks[6], (C,), jnp.float32),
        "bn2_beta":  0.1 * jax.random.normal(ks[7], (C,), jnp.float32),
        "bn2_mean":  jnp.zeros((C,), jnp.float32),
        "bn2_var":   jnp.ones((C,), jnp.float32),
    }


if __name__ == "__main__":
    B, C, H, W = 2, 4, 16, 16          # ch_in == ch_out so the residual add is valid
    key = jax.random.PRNGKey(0)
    kx, kp = jax.random.split(key)
    x = jax.random.normal(kx, (B, C, H, W), jnp.float32)
    params = _make_params(kp, C)

    fwd = jax.jit(resblk_spatial_forward)
    out = jax.block_until_ready(fwd(x, params))
    ref = jax.block_until_ready(_reference(x, params))

    assert out.shape == (B, C, H, W)
    err = float(jnp.max(jnp.abs(out - ref)))
    # bf16 MXU operands (both convs, BN scales folded into bf16 weights) -> wider
    # tolerance than a pure-f32 path.
    assert jnp.allclose(out, ref, atol=2e-2, rtol=2e-2), f"max abs err = {err}"
    print("KERNEL_OK")
</pallas_src>

<mosaic_0001>
module attributes {stable_mosaic.version = 11 : i64} {
  func.func @kernel(%arg0: i32, %arg1: memref<1x16x128xf32, #tpu.memory_space<vmem>>, %arg2: memref<2x384x128xbf16, #tpu.memory_space<vmem>>, %arg3: memref<2x128xf32, #tpu.memory_space<vmem>>, %arg4: memref<1x16x128xf32, #tpu.memory_space<vmem>>) attributes {dimension_semantics = [#tpu.dimension_semantics<parallel>], iteration_bounds = array<i64: 2>, scalar_prefetch = 0 : i64, scratch_operands = 0 : i64, tpu.core_type = #tpu.core_type<tc>, window_params = [{transform_indices = @transform_0, window_bounds = array<i64: 1, 16, 128>}, {pipeline_mode = #tpu.pipeline_mode<synchronous>, transform_indices = @transform_1, window_bounds = array<i64: 2, 384, 128>}, {pipeline_mode = #tpu.pipeline_mode<synchronous>, transform_indices = @transform_2, window_bounds = array<i64: 2, 128>}, {transform_indices = @transform_3, window_bounds = array<i64: 1, 16, 128>}]} {
    %c0 = arith.constant 0 : index
    %c0_0 = arith.constant 0 : index
    %c0_1 = arith.constant 0 : index
    %0 = vector.load %arg1[%c0, %c0_0, %c0_1] : memref<1x16x128xf32, #tpu.memory_space<vmem>>, vector<1x16x128xf32>
    %1 = vector.shape_cast %0 : vector<1x16x128xf32> to vector<16x128xf32>
    %c0_2 = arith.constant 0 : index
    %c0_3 = arith.constant 0 : index
    %2 = vector.load %arg3[%c0_2, %c0_3] : memref<2x128xf32, #tpu.memory_space<vmem>>, vector<2x128xf32>
    %3 = arith.truncf %1 : vector<16x128xf32> to vector<16x128xbf16>
    %cst = arith.constant 0.000000e+00 : bf16
    %4 = vector.broadcast %cst : bf16 to vector<1x128xbf16>
    %5 = vector.extract_strided_slice %3 {offsets = [0, 0], sizes = [15, 128], strides = [1, 1]} : vector<16x128xbf16> to vector<15x128xbf16>
    %6 = tpu.concatenate %4, %5 in 0 : vector<1x128xbf16>, vector<15x128xbf16> -> vector<16x128xbf16>
    %7 = vector.extract_strided_slice %3 {offsets = [1, 0], sizes = [15, 128], strides = [1, 1]} : vector<16x128xbf16> to vector<15x128xbf16>
    %8 = tpu.concatenate %7, %4 in 0 : vector<15x128xbf16>, vector<1x128xbf16> -> vector<16x128xbf16>
    %9 = tpu.concatenate %6, %3, %8 in 1 : vector<16x128xbf16>, vector<16x128xbf16>, vector<16x128xbf16> -> vector<16x384xbf16>
    %c0_4 = arith.constant 0 : index
    %c0_5 = arith.constant 0 : index
    %c0_6 = arith.constant 0 : index
    %10 = vector.load %arg2[%c0_4, %c0_5, %c0_6] : memref<2x384x128xbf16, #tpu.memory_space<vmem>>, vector<1x384x128xbf16>
    %11 = vector.shape_cast %10 : vector<1x384x128xbf16> to vector<384x128xbf16>
    %cst_7 = arith.constant dense<0.000000e+00> : vector<16x128xf32>
    %12 = tpu.matmul %9, %11, %cst_7 {dimension_numbers = #tpu.dot_dimension_numbers<[1], [0], [0], [1], [0, 0, 1, 1], [], []>} : vector<16x384xbf16>, vector<384x128xbf16>, vector<16x128xf32> -> vector<16x128xf32>
    %13 = vector.extract_strided_slice %2 {offsets = [0, 0], sizes = [1, 128], strides = [1, 1]} : vector<2x128xf32> to vector<1x128xf32>
    %14 = vector.broadcast %13 : vector<1x128xf32> to vector<16x128xf32>
    %15 = arith.addf %12, %14 : vector<16x128xf32>
    %cst_8 = arith.constant 0.000000e+00 : f32
    %16 = vector.broadcast %cst_8 : f32 to vector<16x128xf32>
    %17 = arith.maximumf %15, %16 : vector<16x128xf32>
    %18 = arith.truncf %17 : vector<16x128xf32> to vector<16x128xbf16>
    %cst_9 = arith.constant 0.000000e+00 : bf16
    %19 = vector.broadcast %cst_9 : bf16 to vector<1x128xbf16>
    %20 = vector.extract_strided_slice %18 {offsets = [0, 0], sizes = [15, 128], strides = [1, 1]} : vector<16x128xbf16> to vector<15x128xbf16>
    %21 = tpu.concatenate %19, %20 in 0 : vector<1x128xbf16>, vector<15x128xbf16> -> vector<16x128xbf16>
    %22 = vector.extract_strided_slice %18 {offsets = [1, 0], sizes = [15, 128], strides = [1, 1]} : vector<16x128xbf16> to vector<15x128xbf16>
    %23 = tpu.concatenate %22, %19 in 0 : vector<15x128xbf16>, vector<1x128xbf16> -> vector<16x128xbf16>
    %24 = tpu.concatenate %21, %18, %23 in 1 : vector<16x128xbf16>, vector<16x128xbf16>, vector<16x128xbf16> -> vector<16x384xbf16>
    %c1 = arith.constant 1 : index
    %c0_10 = arith.constant 0 : index
    %c0_11 = arith.constant 0 : index
    %25 = vector.load %arg2[%c1, %c0_10, %c0_11] : memref<2x384x128xbf16, #tpu.memory_space<vmem>>, vector<1x384x128xbf16>
    %26 = vector.shape_cast %25 : vector<1x384x128xbf16> to vector<384x128xbf16>
    %cst_12 = arith.constant dense<0.000000e+00> : vector<16x128xf32>
    %27 = tpu.matmul %24, %26, %cst_12 {dimension_numbers = #tpu.dot_dimension_numbers<[1], [0], [0], [1], [0, 0, 1, 1], [], []>} : vector<16x384xbf16>, vector<384x128xbf16>, vector<16x128xf32> -> vector<16x128xf32>
    %28 = vector.extract_strided_slice %2 {offsets = [1, 0], sizes = [1, 128], strides = [1, 1]} : vector<2x128xf32> to vector<1x128xf32>
    %29 = vector.broadcast %28 : vector<1x128xf32> to vector<16x128xf32>
    %30 = arith.addf %27, %29 : vector<16x128xf32>
    %31 = arith.addf %1, %30 : vector<16x128xf32>
    %c0_13 = arith.constant 0 : index
    %c0_14 = arith.constant 0 : index
    %c0_15 = arith.constant 0 : index
    %32 = vector.load %arg4[%c0_13, %c0_14, %c0_15] : memref<1x16x128xf32, #tpu.memory_space<vmem>>, vector<1x16x128xf32>
    %33 = vector.shape_cast %32 : vector<1x16x128xf32> to vector<16x128xf32>
    %34 = vector.shape_cast %31 : vector<16x128xf32> to vector<1x16x128xf32>
    tpu.vector_store %arg4[%c0_13, %c0_14, %c0_15], %34 {strides = array<i32>} : memref<1x16x128xf32, #tpu.memory_space<vmem>>, vector<1x16x128xf32>,
    return
  }
  func.func @transform_0(%arg0: i32) -> (i32, i32, i32) {
    %c0_i32 = arith.constant 0 : i32
    %c0_i32_0 = arith.constant 0 : i32
    %c0_i32_1 = arith.constant 0 : i32
    return %arg0, %c0_i32, %c0_i32_0 : i32, i32, i32
  }
  func.func @transform_1(%arg0: i32) -> (i32, i32, i32) {
    %c0_i32 = arith.constant 0 : i32
    %c0_i32_0 = arith.constant 0 : i32
    %c0_i32_1 = arith.constant 0 : i32
    %c0_i32_2 = arith.constant 0 : i32
    return %c0_i32, %c0_i32_0, %c0_i32_1 : i32, i32, i32
  }
  func.func @transform_2(%arg0: i32) -> (i32, i32) {
    %c0_i32 = arith.constant 0 : i32
    %c0_i32_0 = arith.constant 0 : i32
    %c0_i32_1 = arith.constant 0 : i32
    return %c0_i32, %c0_i32_0 : i32, i32
  }
  func.func @transform_3(%arg0: i32) -> (i32, i32, i32) {
    %c0_i32 = arith.constant 0 : i32
    %c0_i32_0 = arith.constant 0 : i32
    %c0_i32_1 = arith.constant 0 : i32
    return %arg0, %c0_i32, %c0_i32_0 : i32, i32, i32
  }
}

</mosaic_0001>

<llo_original>
// kernel: tile.13
$region0: #{tile.13}
  #allocation0 [shape = 's32[1]{0}', space=sflag, size = 0x4, scoped, tag = 'scoped memory for tile.13']
  %s0 = inlined_call_operand.vmem [shape: f32[8], index: 0, kind: input, shape index: {}]
  %s1 = inlined_call_operand.vmem [shape: f32[16,8], index: 1, kind: output, shape index: {}]
  // Predicated region
  $region2: #{tile.13} parent=0 // pred_check
    _
  $region3: #{tile.13} parent=0 // pred_check_branch
    %3 = sbr.rel (0) target = $region5
  $region4: #{tile.13} parent=0 // pred_region
    _
  $region5: #{tile.13} parent=0 // pred_fallthru
    _
  %v4 = vld [vmem:[%s0] ss:$0 sm:$0xff]
  %5 = vst [vmem:[%s1] sm:$0xff] %v4
  %s6 = scalar_lea.vmem %s1, 8
  %7 = vst [vmem:[%s6] sm:$0xff] %v4

// kernel: tile.18
$region0: #{tile.18}
  %s0 = inlined_call_operand.vmem [shape: f32[16,8], index: 0, kind: input, shape index: {}]
  %s1 = inlined_call_operand.vmem [shape: f32[1,128], index: 1, kind: output, shape index: {}]
  $region1: #{tile.18} parent=0
    #allocation0 [shape = 'u8[4096]{0}', space=vmem, size = 0x1000, scoped, tag = 'scoped mem for output reshape']
    %v2 = vld [vmem:[%s0] sm:$0x1]
    %vm3 = vcmask 64512
    %4 = vst.msk [vmem:[#allocation0] sm:$0x1] %vm3, %v2
    %s5 = scalar_lea.vmem %s0, 15
    %v6 = vld [vmem:[%s5] sm:$0x1]
    %7 = vrot.lane.b32.xlu0 %v6, 120
    %v8 = vpop.permute.xlu0 %7
    %vm9 = vcmask 1048512
    %10 = vst.msk [vmem:[#allocation0] sm:$0x1] %vm9, %v8
    %s11 = scalar_lea.vmem %s0, 14
    %v12 = vld [vmem:[%s11] sm:$0x1]
    %13 = vrot.lane.b32.xlu0 %v12, 112
    %v14 = vpop.permute.xlu0 %13
    %vm15 = vcmask 982912
    %16 = vst.msk [vmem:[#allocation0] sm:$0x1] %vm15, %v14
    %s17 = scalar_lea.vmem %s0, 13
    %v18 = vld [vmem:[%s17] sm:$0x1]
    %19 = vrot.lane.b32.xlu0 %v18, 104
    %v20 = vpop.permute.xlu0 %19
    %vm21 = vcmask 917312
    %22 = vst.msk [vmem:[#allocation0] sm:$0x1] %vm21, %v20
    %s23 = scalar_lea.vmem %s0, 12
    %v24 = vld [vmem:[%s23] sm:$0x1]
    %25 = vrot.lane.b32.xlu0 %v24, 96
    %v26 = vpop.permute.xlu0 %25
    %vm27 = vcmask 851712
    %28 = vst.msk [vmem:[#allocation0] sm:$0x1] %vm27, %v26
    %s29 = scalar_lea.vmem %s0, 11
    %v30 = vld [vmem:[%s29] sm:$0x1]
    %31 = vrot.lane.b32.xlu0 %v30, 88
    %v32 = vpop.permute.xlu0 %31
    %vm33 = vcmask 786112
    %34 = vst.msk [vmem:[#allocation0] sm:$0x1] %vm33, %v32
    %s35 = scalar_lea.vmem %s0, 10
    %v36 = vld [vmem:[%s35] sm:$0x1]
    %37 = vrot.lane.b32.xlu0 %v36, 80
    %v38 = vpop.permute.xlu0 %37
    %vm39 = vcmask 720512
    %40 = vst.msk [vmem:[#allocation0] sm:$0x1] %vm39, %v38
    %s41 = scalar_lea.vmem %s0, 9
    %v42 = vld [vmem:[%s41] sm:$0x1]
    %43 = vrot.lane.b32.xlu0 %v42, 72
    %v44 = vpop.permute.xlu0 %43
    %vm45 = vcmask 654912
    %46 = vst.msk [vmem:[#allocation0] sm:$0x1] %vm45, %v44
    %s47 = scalar_lea.vmem %s0, 8
    %v48 = vld [vmem:[%s47] sm:$0x1]
    %49 = vrot.lane.b32.xlu0 %v48, 64
    %v50 = vpop.permute.xlu0 %49
    %vm51 = vcmask 589312
    %52 = vst.msk [vmem:[#allocation0] sm:$0x1] %vm51, %v50
    %s53 = scalar_lea.vmem %s0, 7
    %v54 = vld [vmem:[%s53] sm:$0x1]
    %55 = vrot.lane.b32.xlu0 %v54, 56
    %v56 = vpop.permute.xlu0 %55
    %vm57 = vcmask 523712
    %58 = vst.msk [vmem:[#allocation0] sm:$0x1] %vm57, %v56
    %s59 = scalar_lea.vmem %s0, 6
    %v60 = vld [vmem:[%s59] sm:$0x1]
    %61 = vrot.lane.b32.xlu0 %v60, 48
    %v62 = vpop.permute.xlu0 %61
    %vm63 = vcmask 458112
    %64 = vst.msk [vmem:[#allocation0] sm:$0x1] %vm63, %v62
    %s65 = scalar_lea.vmem %s0, 5
    %v66 = vld [vmem:[%s65] sm:$0x1]
    %67 = vrot.lane.b32.xlu0 %v66, 40
    %v68 = vpop.permute.xlu0 %67
    %vm69 = vcmask 392512
    %70 = vst.msk [vmem:[#allocation0] sm:$0x1] %vm69, %v68
    %s71 = scalar_lea.vmem %s0, 4
    %v72 = vld [vmem:[%s71] sm:$0x1]
    %73 = vrot.lane.b32.xlu0 %v72, 32
    %v74 = vpop.permute.xlu0 %73
    %vm75 = vcmask 326912
    %76 = vst.msk [vmem:[#allocation0] sm:$0x1] %vm75, %v74
    %s77 = scalar_lea.vmem %s0, 3
    %v78 = vld [vmem:[%s77] sm:$0x1]
    %79 = vrot.lane.b32.xlu0 %v78, 24
    %v80 = vpop.permute.xlu0 %79
    %vm81 = vcmask 261312
    %82 = vst.msk [vmem:[#allocation0] sm:$0x1] %vm81, %v80
    %s83 = scalar_lea.vmem %s0, 2
    %v84 = vld [vmem:[%s83] sm:$0x1]
    %85 = vrot.lane.b32.xlu0 %v84, 16
    %v86 = vpop.permute.xlu0 %85
    %vm87 = vcmask 195712
    %88 = vst.msk [vmem:[#allocation0] sm:$0x1] %vm87, %v86
    %s89 = scalar_lea.vmem %s0, 1
    %v90 = vld [vmem:[%s89] sm:$0x1]
    %91 = vrot.lane.b32.xlu0 %v90, 8
    %v92 = vpop.permute.xlu0 %91
    %vm93 = vcmask 130112
    %94 = vst.msk [vmem:[#allocation0] sm:$0x1] %vm93, %v92
    %s96 = sshllo.u32 0, 1
    %v98 = vld [vmem:[#allocation0] sm:%s96]
    %s99 = sshllo.u32 0, 1
    %100 = vst [vmem:[%s1] sm:%s99] %v98

// kernel: resblk_spatial_forward.1
$region0: #{resblk_spatial_forward.1}
  #allocation0 [shape = 'u32[]', space=smem, size = 0x4, offset = 0x4, fixed_abs, tag = 'smem constant byte address 0x4 - core index']
  #allocation1 [shape = 'u32[144,128]{1,0:T(1,128)}', space=vmem, size = 0x12000, scoped, tag = 'internal scratch']
  %s0 = inlined_call_operand.vmem [shape: f32[2,16,128], index: 0, kind: input, shape index: {}]
  %s1 = inlined_call_operand.vmem [shape: bf16[2,384,128], index: 1, kind: input, shape index: {}]
  %s2 = inlined_call_operand.vmem [shape: f32[2,128], index: 2, kind: input, shape index: {}]
  %s3 = inlined_call_operand.vmem [shape: f32[2,16,128], index: 3, kind: output, shape index: {}]
  %s4 = sld [smem:[#allocation0]]
  $region45: #{resblk_spatial_forward.1} parent=0
    _
  %s6 = ssub.s32 1, %s4
  %s7 = scalar_select 0, %s6, %s4
  loop: start=0, step=1, limit=4
  $region2: #{resblk_spatial_forward.1} parent=0 // loop_pre_header
    _
  $region3: #{resblk_spatial_forward.1} parent=0 // loop_header
    %s9 = sphi 0, %s13
    %p10 = scmp.ge.s32.totalorder %s9, 4
    %s19 = sphi 0, %s21
    %s22 = sphi 0, %s19
    %s23 = sphi 0, %s22
    %s39 = sphi 0, %s23
    %s43 = sphi 0, %s43
    %s45 = sphi 0, %s43
    %s46 = sphi 0, %s45
    %s60 = sphi 0, %s46
    %s64 = sphi 0, %s64
    %s66 = sphi 0, %s64
    %s67 = sphi 0, %s66
    %s81 = sphi 0, %s67
    %s87 = sphi 0, %s89
    %s90 = sphi 0, %s87
    %s91 = sphi 0, %s90
    %s107 = sphi 0, %s91
  $region4: #{resblk_spatial_forward.1} parent=0 // loop_header_branch
    %12 = sbr.rel (%p10) target = $region8
  $region5: #{resblk_spatial_forward.1} parent=0 // loop_body
    %s14 = ssub.s32 %s9, 1
    %s15 = ssub.s32 %s9, 2
    %s16 = sadd.s32 %s9, 1
    %s17 = ssub.s32 %s9, %s16
    %p18 = scmp.eq.s32.totalorder %s17, 0
    %s20 = sadd.s32 %s19, 1
    %s21 = scalar_select %p18, %s19, %s20
    %p24 = pneg %p18
    %p25 = scmp.eq.s32.totalorder %s9, 1
    %p26 = por %p24, %p25
    %p27 = scmp.ne.s32.totalorder %s19, %s22
    %p28 = scmp.eq.s32.totalorder %s9, 0
    %p29 = por %p27, %p28
    %p30 = scmp.ne.s32.totalorder %s19, %s22
    %p31 = scmp.eq.s32.totalorder %s14, 1
    %p32 = por %p30, %p31
    %p33 = scmp.ne.s32.totalorder %s22, %s23
    %p34 = scmp.eq.s32.totalorder %s14, 0
    %p35 = por %p33, %p34
    %p36 = scmp.ne.s32.totalorder %s22, %s23
    %p37 = scmp.eq.s32.totalorder %s15, 1
    %p38 = por %p36, %p37
    %p40 = scmp.ne.s32.totalorder %s23, %s39
    %p41 = scmp.eq.s32.totalorder %s15, 0
    %p42 = por %p40, %p41
    %s44 = sadd.s32 %s43, 1
    %p47 = scmp.eq.s32.totalorder %s9, 1
    %p48 = scmp.ne.s32.totalorder %s43, %s45
    %p49 = scmp.eq.s32.totalorder %s9, 0
    %p50 = por %p48, %p49
    %p51 = scmp.ne.s32.totalorder %s43, %s45
    %p52 = scmp.eq.s32.totalorder %s14, 1
    %p53 = por %p51, %p52
    %p54 = scmp.ne.s32.totalorder %s45, %s46
    %p55 = scmp.eq.s32.totalorder %s14, 0
    %p56 = por %p54, %p55
    %p57 = scmp.ne.s32.totalorder %s45, %s46
    %p58 = scmp.eq.s32.totalorder %s15, 1
    %p59 = por %p57, %p58
    %p61 = scmp.ne.s32.totalorder %s46, %s60
    %p62 = scmp.eq.s32.totalorder %s15, 0
    %p63 = por %p61, %p62
    %s65 = sadd.s32 %s64, 1
    %p68 = scmp.eq.s32.totalorder %s9, 1
    %p69 = scmp.ne.s32.totalorder %s64, %s66
    %p70 = scmp.eq.s32.totalorder %s9, 0
    %p71 = por %p69, %p70
    %p72 = scmp.ne.s32.totalorder %s64, %s66
    %p73 = scmp.eq.s32.totalorder %s14, 1
    %p74 = por %p72, %p73
    %p75 = scmp.ne.s32.totalorder %s66, %s67
    %p76 = scmp.eq.s32.totalorder %s14, 0
    %p77 = por %p75, %p76
    %p78 = scmp.ne.s32.totalorder %s66, %s67
    %p79 = scmp.eq.s32.totalorder %s15, 1
    %p80 = por %p78, %p79
    %p82 = scmp.ne.s32.totalorder %s67, %s81
    %p83 = scmp.eq.s32.totalorder %s15, 0
    %p84 = por %p82, %p83
    %s85 = ssub.s32 %s9, %s16
    %p86 = scmp.eq.s32.totalorder %s85, 0
    %s88 = sadd.s32 %s87, 1
    %s89 = scalar_select %p86, %s87, %s88
    %p92 = pneg %p86
    %p93 = scmp.eq.s32.totalorder %s9, 1
    %p94 = por %p92, %p93
    %p95 = scmp.ne.s32.totalorder %s87, %s90
    %p96 = scmp.eq.s32.totalorder %s9, 0
    %p97 = por %p95, %p96
    %p98 = scmp.ne.s32.totalorder %s87, %s90
    %p99 = scmp.eq.s32.totalorder %s14, 1
    %p100 = por %p98, %p99
    %p101 = scmp.ne.s32.totalorder %s90, %s91
    %p102 = scmp.eq.s32.totalorder %s14, 0
    %p103 = por %p101, %p102
    %p104 = scmp.ne.s32.totalorder %s90, %s91
    %p105 = scmp.eq.s32.totalorder %s15, 1
    %p106 = por %p104, %p105
    %p108 = scmp.ne.s32.totalorder %s91, %s107
    %p109 = scmp.eq.s32.totalorder %s15, 0
    %p110 = por %p108, %p109
    %p111 = scmp.le.s32.totalorder 1, %s9
    %p112 = scmp.lt.s32.totalorder %s9, 3
    %p113 = pnand %p111, %p112
    %p114 = pneg %p113
    // Predicated region
    $region9: #{resblk_spatial_forward.1} parent=5 // pred_check
      _
    $region10: #{resblk_spatial_forward.1} parent=5 // pred_check_branch
      %116 = sbr.rel (%p113) target = $region12
    $region11: #{resblk_spatial_forward.1} parent=5 // pred_region
      %s117 = ssub.s32 %s9, 1
      // Predicated region
      $region13: #{resblk_spatial_forward.1} parent=11 // pred_check
        %p118 = pneg %p56
      $region14: #{resblk_spatial_forward.1} parent=11 // pred_check_branch
        %120 = sbr.rel (%p118) target = $region16
      $region15: #{resblk_spatial_forward.1} parent=11 // pred_region
        _
      $region16: #{resblk_spatial_forward.1} parent=11 // pred_fallthru
        _
      // Predicated region
      $region17: #{resblk_spatial_forward.1} parent=11 // pred_check
        %p121 = pneg %p77
      $region18: #{resblk_spatial_forward.1} parent=11 // pred_check_branch
        %123 = sbr.rel (%p121) target = $region20
      $region19: #{resblk_spatial_forward.1} parent=11 // pred_region
        _
      $region20: #{resblk_spatial_forward.1} parent=11 // pred_fallthru
        _
    $region12: #{resblk_spatial_forward.1} parent=5 // pred_fallthru
      _
    %p124 = scmp.lt.s32.totalorder %s9, 2
    // Predicated region
    $region21: #{resblk_spatial_forward.1} parent=5 // pred_check
      %p125 = pneg %p124
    $region22: #{resblk_spatial_forward.1} parent=5 // pred_check_branch
      %127 = sbr.rel (%p125) target = $region24
    $region23: #{resblk_spatial_forward.1} parent=5 // pred_region
      // Predicated region
      $region25: #{resblk_spatial_forward.1} parent=23 // pred_check
        %p128 = pneg %p29
      $region26: #{resblk_spatial_forward.1} parent=23 // pred_check_branch
        %130 = sbr.rel (%p128) target = $region28
      $region27: #{resblk_spatial_forward.1} parent=23 // pred_region
        %p131 = scmp.lt.s32.totalorder %s9, 1
        %s132 = scalar_select %p131, %s9, 1
        %s133 = smul.addr %s132, 2
        %s134 = smul.addr %s133, 8
        %s135 = scalar_lea.vmem %s0, %s134
      $region28: #{resblk_spatial_forward.1} parent=23 // pred_fallthru
        _
    $region24: #{resblk_spatial_forward.1} parent=5 // pred_fallthru
      _
    %p136 = scmp.le.s32.totalorder 1, %s9
    %p137 = scmp.lt.s32.totalorder %s9, 3
    %p138 = pnand %p136, %p137
    %p139 = pneg %p138
    // Predicated region
    $region29: #{resblk_spatial_forward.1} parent=5 // pred_check
      _
    $region30: #{resblk_spatial_forward.1} parent=5 // pred_check_branch
      %141 = sbr.rel (%p138) target = $region32
    $region31: #{resblk_spatial_forward.1} parent=5 // pred_region
      %s142 = ssub.s32 %s9, 1
      %p143 = scmp.lt.s32.totalorder %s14, 1
      %s144 = scalar_select %p143, %s14, 1
      %s145 = smul.addr %s144, 2
      %s146 = smul.addr %s145, 8
      %s147 = scalar_lea.vmem %s0, %s146
      %p148 = pneg %p35
      %p149 = pneg %p32
      %p150 = pneg %p56
      %p151 = pneg %p53
      %p152 = pneg %p77
      %p153 = pneg %p74
      %p154 = pneg %p103
      %p155 = pneg %p100
      %p156 = scmp.lt.s32.totalorder %s14, 1
      %s157 = scalar_select %p156, %s14, 1
      %s158 = smul.addr %s157, 2
      %s159 = smul.addr %s158, 8
      %s160 = scalar_lea.vmem %s3, %s159
      %p161 = scmp.lt.s32.totalorder %s14, 1
      %s162 = scalar_select %p161, %s14, 1
      %s163 = smul.addr %s162, 2
      %s164 = smul.addr %s163, 8
      %s165 = scalar_lea.vmem %s0, %s164
      %p166 = scmp.lt.s32.totalorder %s14, 1
      %s167 = scalar_select %p166, %s14, 1
      %s168 = smul.addr %s167, 2
      %s169 = smul.addr %s168, 8
      %s170 = scalar_lea.vmem %s3, %s169
      %v172 = vld [vmem:[%s165] sm:$0xff]
      %v173 = vld [vmem:[%s165 + $0x8] sm:$0xff]
      %v174 = vld [vmem:[%s2] sm:$0x3]
      %v175 = vpack.c.bf16 %v173, %v172
      %v177 = vshrl.u32 %v175, 16
      %v179 = vrot.slane %v177, 7
      %v180 = vshll.u32 %v175, 16
      %v182 = vor.u32 %v179, %v180
      %vm184 = vcmask 1040384
      %vm185 = vsmask.f32 256
      %vm186 = vmand %vm184, %vm185
      %v187 = vsel %vm186, 0, %v182
      %v188 = vrot.slane %v180, 1
      %v189 = vor.u32 %v177, %v188
      %vm191 = vcmask 1047552
      %vm192 = vsmask.f32 7424
      %vm193 = vmand %vm191, %vm192
      %v194 = vsel %vm193, %v189, 0
      %v195 = vld [vmem:[%s1] sm:$0xf]
      %v196 = vld [vmem:[%s1 + $0x4] sm:$0xf]
      %v197 = vld [vmem:[%s1 + $0x8] sm:$0xf]
      %v198 = vld [vmem:[%s1 + $0xc] sm:$0xf]
      %v199 = vld [vmem:[%s1 + $0x10] sm:$0xf]
      %v200 = vld [vmem:[%s1 + $0x14] sm:$0xf]
      %v201 = vld [vmem:[%s1 + $0x18] sm:$0xf]
      %v202 = vld [vmem:[%s1 + $0x1c] sm:$0xf]
      %v203 = vld [vmem:[%s1 + $0x20] sm:$0xf]
      %v204 = vld [vmem:[%s1 + $0x24] sm:$0xf]
      %v205 = vld [vmem:[%s1 + $0x28] sm:$0xf]
      %v206 = vld [vmem:[%s1 + $0x2c] sm:$0xf]
      %v207 = vld [vmem:[%s1 + $0x30] sm:$0xf]
      %v208 = vld [vmem:[%s1 + $0x34] sm:$0xf]
      %v209 = vld [vmem:[%s1 + $0x38] sm:$0xf]
      %v210 = vld [vmem:[%s1 + $0x3c] sm:$0xf]
      %v211 = vld [vmem:[%s1 + $0x40] sm:$0xf]
      %v212 = vld [vmem:[%s1 + $0x44] sm:$0xf]
      %v213 = vld [vmem:[%s1 + $0x48] sm:$0xf]
      %v214 = vld [vmem:[%s1 + $0x4c] sm:$0xf]
      %v215 = vld [vmem:[%s1 + $0x50] sm:$0xf]
      %v216 = vld [vmem:[%s1 + $0x54] sm:$0xf]
      %v217 = vld [vmem:[%s1 + $0x58] sm:$0xf]
      %v218 = vld [vmem:[%s1 + $0x5c] sm:$0xf]
      %v219 = vld [vmem:[%s1 + $0x60] sm:$0xf]
      %v220 = vld [vmem:[%s1 + $0x64] sm:$0xf]
      %v221 = vld [vmem:[%s1 + $0x68] sm:$0xf]
      %v222 = vld [vmem:[%s1 + $0x6c] sm:$0xf]
      %v223 = vld [vmem:[%s1 + $0x70] sm:$0xf]
      %v224 = vld [vmem:[%s1 + $0x74] sm:$0xf]
      %v225 = vld [vmem:[%s1 + $0x78] sm:$0xf]
      %v226 = vld [vmem:[%s1 + $0x7c] sm:$0xf]
      %v227 = vld [vmem:[%s1 + $0x80] sm:$0xf]
      %v228 = vld [vmem:[%s1 + $0x84] sm:$0xf]
      %v229 = vld [vmem:[%s1 + $0x88] sm:$0xf]
      %v230 = vld [vmem:[%s1 + $0x8c] sm:$0xf]
      %v231 = vld [vmem:[%s1 + $0x90] sm:$0xf]
      %v232 = vld [vmem:[%s1 + $0x94] sm:$0xf]
      %v233 = vld [vmem:[%s1 + $0x98] sm:$0xf]
      %v234 = vld [vmem:[%s1 + $0x9c] sm:$0xf]
      %v235 = vld [vmem:[%s1 + $0xa0] sm:$0xf]
      %v236 = vld [vmem:[%s1 + $0xa4] sm:$0xf]
      %v237 = vld [vmem:[%s1 + $0xa8] sm:$0xf]
      %v238 = vld [vmem:[%s1 + $0xac] sm:$0xf]
      %v239 = vld [vmem:[%s1 + $0xb0] sm:$0xf]
      %v240 = vld [vmem:[%s1 + $0xb4] sm:$0xf]
      %v241 = vld [vmem:[%s1 + $0xb8] sm:$0xf]
      %v242 = vld [vmem:[%s1 + $0xbc] sm:$0xf]
      %v243 = vlaneseq
      %v244 = vshrl.u32 %v243, 7
      %v245 = vsub.s32 0, %v244
      %v246 = vrot.slane %v174, %v245
      %v295 = vunpack.c.l.b16 %v195
      %v296 = vunpack.c.l.b16 %v196
      %v297 = vunpack.c.l.b16 %v197
      %v298 = vunpack.c.l.b16 %v198
      %v299 = vunpack.c.l.b16 %v199
      %v300 = vunpack.c.l.b16 %v200
      %v301 = vunpack.c.l.b16 %v201
      %v302 = vunpack.c.l.b16 %v202
      %v303 = vunpack.c.l.b16 %v203
      %v304 = vunpack.c.l.b16 %v204
      %v305 = vunpack.c.l.b16 %v205
      %v306 = vunpack.c.l.b16 %v206
      %v307 = vunpack.c.l.b16 %v207
      %v308 = vunpack.c.l.b16 %v208
      %v309 = vunpack.c.l.b16 %v209
      %v310 = vunpack.c.l.b16 %v210
      %v311 = vunpack.c.l.b16 %v211
      %v312 = vunpack.c.l.b16 %v212
      %v313 = vunpack.c.l.b16 %v213
      %v314 = vunpack.c.l.b16 %v214
      %v315 = vunpack.c.l.b16 %v215
      %v316 = vunpack.c.l.b16 %v216
      %v317 = vunpack.c.l.b16 %v217
      %v318 = vunpack.c.l.b16 %v218
      %v319 = vunpack.c.l.b16 %v219
      %v320 = vunpack.c.l.b16 %v220
      %v321 = vunpack.c.l.b16 %v221
      %v322 = vunpack.c.l.b16 %v222
      %v323 = vunpack.c.l.b16 %v223
      %v324 = vunpack.c.l.b16 %v224
      %v325 = vunpack.c.l.b16 %v225
      %v326 = vunpack.c.l.b16 %v226
      %v327 = vunpack.c.l.b16 %v227
      %v328 = vunpack.c.l.b16 %v228
      %v329 = vunpack.c.l.b16 %v229
      %v330 = vunpack.c.l.b16 %v230
      %v331 = vunpack.c.l.b16 %v231
      %v332 = vunpack.c.l.b16 %v232
      %v333 = vunpack.c.l.b16 %v233
      %v334 = vunpack.c.l.b16 %v234
      %v335 = vunpack.c.l.b16 %v235
      %v336 = vunpack.c.l.b16 %v236
      %v337 = vunpack.c.l.b16 %v237
      %v338 = vunpack.c.l.b16 %v238
      %v339 = vunpack.c.l.b16 %v239
      %v340 = vunpack.c.l.b16 %v240
      %v341 = vunpack.c.l.b16 %v241
      %v342 = vunpack.c.l.b16 %v242
      %v343 = vpack.c.b16 %v296, %v295
      %v344 = vpack.c.b16 %v298, %v297
      %v345 = vpack.c.b16 %v300, %v299
      %v346 = vpack.c.b16 %v302, %v301
      %v347 = vpack.c.b16 %v304, %v303
      %v348 = vpack.c.b16 %v306, %v305
      %v349 = vpack.c.b16 %v308, %v307
      %v350 = vpack.c.b16 %v310, %v309
      %v351 = vpack.c.b16 %v312, %v311
      %v352 = vpack.c.b16 %v314, %v313
      %v353 = vpack.c.b16 %v316, %v315
      %v354 = vpack.c.b16 %v318, %v317
      %v355 = vpack.c.b16 %v320, %v319
      %v356 = vpack.c.b16 %v322, %v321
      %v357 = vpack.c.b16 %v324, %v323
      %v358 = vpack.c.b16 %v326, %v325
      %v359 = vpack.c.b16 %v328, %v327
      %v360 = vpack.c.b16 %v330, %v329
      %v361 = vpack.c.b16 %v332, %v331
      %v362 = vpack.c.b16 %v334, %v333
      %v363 = vpack.c.b16 %v336, %v335
      %v364 = vpack.c.b16 %v338, %v337
      %v365 = vpack.c.b16 %v340, %v339
      %v366 = vpack.c.b16 %v342, %v341
      %391 = vmatprep.subr.bf16.mxu0 0
      %392 = vmatpush1.bf16.msra.mxu0 %v343
      %393 = vmatprep.subr.bf16.mxu0 0
      %394 = vmatpush1.bf16.msra.mxu0 %v344
      %395 = vmatprep.subr.bf16.mxu0 0
      %396 = vmatpush1.bf16.msra.mxu0 %v345
      %397 = vmatprep.subr.bf16.mxu0 0
      %398 = vmatpush1.bf16.msra.mxu0 %v346
      %399 = vmatprep.subr.bf16.mxu0 0
      %400 = vmatpush1.bf16.msra.mxu0 %v347
      %401 = vmatprep.subr.bf16.mxu0 0
      %402 = vmatpush1.bf16.msra.mxu0 %v348
      %403 = vmatprep.subr.bf16.mxu0 0
      %404 = vmatpush1.bf16.msra.mxu0 %v349
      %405 = vmatprep.subr.bf16.mxu0 0
      %406 = vmatpush1.bf16.msra.mxu0 %v350
      %407 = vmatprep.subr.bf16.mxu0 0
      %408 = vmatpush1.bf16.msra.mxu0 %v351
      %409 = vmatprep.subr.bf16.mxu0 0
      %410 = vmatpush1.bf16.msra.mxu0 %v352
      %411 = vmatprep.subr.bf16.mxu0 0
      %412 = vmatpush1.bf16.msra.mxu0 %v353
      %413 = vmatprep.subr.bf16.mxu0 0
      %414 = vmatpush1.bf16.msra.mxu0 %v354
      %415 = vmatprep.subr.bf16.mxu0 0
      %416 = vmatpush1.bf16.msra.mxu0 %v355
      %417 = vmatprep.subr.bf16.mxu0 0
      %418 = vmatpush1.bf16.msra.mxu0 %v356
      %419 = vmatprep.subr.bf16.mxu0 0
      %420 = vmatpush1.bf16.msra.mxu0 %v357
      %421 = vmatprep.subr.bf16.mxu0 0
      %422 = vmatpush1.bf16.msra.mxu0 %v358
      %423 = vmatprep.mubr.bf16.mxu0 %v175
      %424 = vmatmul.mubr.bf16.gmra.mrb[0].mxu0 %v187
      %v425 = vpop.f32.mrb[0].mxu0
      %v426 = vadd.f32 %v246, %v425
      %v427 = vpop.f32.mrb[0].mxu0
      %v428 = vpop.f32.mrb[0].mxu0
      %v429 = vadd.f32 %v246, %v428
      %v430 = vpop.f32.mrb[0].mxu0
      %431 = vdwg.mxu0
      %432 = vmatprep.subr.bf16.mxu0 0
      %433 = vmatpush1.bf16.msra.mxu0 %v359
      %434 = vmatprep.subr.bf16.mxu0 0
      %435 = vmatpush1.bf16.msra.mxu0 %v360
      %436 = vmatprep.subr.bf16.mxu0 0
      %437 = vmatpush1.bf16.msra.mxu0 %v361
      %438 = vmatprep.subr.bf16.mxu0 0
      %439 = vmatpush1.bf16.msra.mxu0 %v362
      %440 = vmatprep.subr.bf16.mxu0 0
      %441 = vmatpush1.bf16.msra.mxu0 %v363
      %442 = vmatprep.subr.bf16.mxu0 0
      %443 = vmatpush1.bf16.msra.mxu0 %v364
      %444 = vmatprep.subr.bf16.mxu0 0
      %445 = vmatpush1.bf16.msra.mxu0 %v365
      %446 = vmatprep.subr.bf16.mxu0 0
      %447 = vmatpush1.bf16.msra.mxu0 %v366
      %448 = vmatprep.subr.bf16.mxu0 0
      %449 = vmatpush1.bf16.msra.mxu0 0
      %450 = vmatprep.subr.bf16.mxu0 0
      %451 = vmatpush1.bf16.msra.mxu0 0
      %452 = vmatprep.subr.bf16.mxu0 0
      %453 = vmatpush1.bf16.msra.mxu0 0
      %454 = vmatprep.subr.bf16.mxu0 0
      %455 = vmatpush1.bf16.msra.mxu0 0
      %456 = vmatprep.subr.bf16.mxu0 0
      %457 = vmatpush1.bf16.msra.mxu0 0
      %458 = vmatprep.subr.bf16.mxu0 0
      %459 = vmatpush1.bf16.msra.mxu0 0
      %460 = vmatprep.subr.bf16.mxu0 0
      %461 = vmatpush1.bf16.msra.mxu0 0
      %462 = vmatprep.subr.bf16.mxu0 0
      %463 = vmatpush1.bf16.msra.mxu0 0
      %464 = vmatprep.mubr.bf16.mxu0 0
      %465 = vmatmul.mubr.bf16.gmra.mrb[0].mxu0 %v194
      %v466 = vpop.f32.mrb[0].mxu0
      %v467 = vadd.f32 %v426, %v466
      %v468 = vpop.f32.mrb[0].mxu0
      %v469 = vpop.f32.mrb[0].mxu0
      %v470 = vadd.f32 %v429, %v469
      %v471 = vpop.f32.mrb[0].mxu0
      %472 = vdwg.mxu0
      %v473 = vmax.f32 %v467, 0.0
      %v474 = vmax.f32 %v470, 0.0
      %v475 = vpack.c.bf16 %v474, %v473
      %v477 = vshrl.u32 %v475, 16
      %v479 = vrot.slane %v477, 7
      %v480 = vshll.u32 %v475, 16
      %v482 = vor.u32 %v479, %v480
      %v484 = vsel %vm186, 0, %v482
      %v485 = vrot.slane %v480, 1
      %v486 = vor.u32 %v477, %v485
      %v488 = vsel %vm193, %v486, 0
      %s489 = scalar_lea.vmem %s1, 192
      %v490 = vld [vmem:[%s489] sm:$0xf]
      %v491 = vld [vmem:[%s489 + $0x4] sm:$0xf]
      %v492 = vld [vmem:[%s489 + $0x8] sm:$0xf]
      %v493 = vld [vmem:[%s489 + $0xc] sm:$0xf]
      %v494 = vld [vmem:[%s489 + $0x10] sm:$0xf]
      %v495 = vld [vmem:[%s489 + $0x14] sm:$0xf]
      %v496 = vld [vmem:[%s489 + $0x18] sm:$0xf]
      %v497 = vld [vmem:[%s489 + $0x1c] sm:$0xf]
      %v498 = vld [vmem:[%s489 + $0x20] sm:$0xf]
      %v499 = vld [vmem:[%s489 + $0x24] sm:$0xf]
      %v500 = vld [vmem:[%s489 + $0x28] sm:$0xf]
      %v501 = vld [vmem:[%s489 + $0x2c] sm:$0xf]
      %v502 = vld [vmem:[%s489 + $0x30] sm:$0xf]
      %v503 = vld [vmem:[%s489 + $0x34] sm:$0xf]
      %v504 = vld [vmem:[%s489 + $0x38] sm:$0xf]
      %v505 = vld [vmem:[%s489 + $0x3c] sm:$0xf]
      %v506 = vld [vmem:[%s489 + $0x40] sm:$0xf]
      %v507 = vld [vmem:[%s489 + $0x44] sm:$0xf]
      %v508 = vld [vmem:[%s489 + $0x48] sm:$0xf]
      %v509 = vld [vmem:[%s489 + $0x4c] sm:$0xf]
      %v510 = vld [vmem:[%s489 + $0x50] sm:$0xf]
      %v511 = vld [vmem:[%s489 + $0x54] sm:$0xf]
      %v512 = vld [vmem:[%s489 + $0x58] sm:$0xf]
      %v513 = vld [vmem:[%s489 + $0x5c] sm:$0xf]
      %v514 = vld [vmem:[%s489 + $0x60] sm:$0xf]
      %v515 = vld [vmem:[%s489 + $0x64] sm:$0xf]
      %v516 = vld [vmem:[%s489 + $0x68] sm:$0xf]
      %v517 = vld [vmem:[%s489 + $0x6c] sm:$0xf]
      %v518 = vld [vmem:[%s489 + $0x70] sm:$0xf]
      %v519 = vld [vmem:[%s489 + $0x74] sm:$0xf]
      %v520 = vld [vmem:[%s489 + $0x78] sm:$0xf]
      %v521 = vld [vmem:[%s489 + $0x7c] sm:$0xf]
      %v522 = vld [vmem:[%s489 + $0x80] sm:$0xf]
      %v523 = vld [vmem:[%s489 + $0x84] sm:$0xf]
      %v524 = vld [vmem:[%s489 + $0x88] sm:$0xf]
      %v525 = vld [vmem:[%s489 + $0x8c] sm:$0xf]
      %v526 = vld [vmem:[%s489 + $0x90] sm:$0xf]
      %v527 = vld [vmem:[%s489 + $0x94] sm:$0xf]
      %v528 = vld [vmem:[%s489 + $0x98] sm:$0xf]
      %v529 = vld [vmem:[%s489 + $0x9c] sm:$0xf]
      %v530 = vld [vmem:[%s489 + $0xa0] sm:$0xf]
      %v531 = vld [vmem:[%s489 + $0xa4] sm:$0xf]
      %v532 = vld [vmem:[%s489 + $0xa8] sm:$0xf]
      %v533 = vld [vmem:[%s489 + $0xac] sm:$0xf]
      %v534 = vld [vmem:[%s489 + $0xb0] sm:$0xf]
      %v535 = vld [vmem:[%s489 + $0xb4] sm:$0xf]
      %v536 = vld [vmem:[%s489 + $0xb8] sm:$0xf]
      %v537 = vld [vmem:[%s489 + $0xbc] sm:$0xf]
      %v538 = vlaneseq
      %v539 = vshrl.u32 %v538, 7
      %v540 = vsub.s32 1, %v539
      %v541 = vrot.slane %v174, %v540
      %v590 = vunpack.c.l.b16 %v490
      %v591 = vunpack.c.l.b16 %v491
      %v592 = vunpack.c.l.b16 %v492
      %v593 = vunpack.c.l.b16 %v493
      %v594 = vunpack.c.l.b16 %v494
      %v595 = vunpack.c.l.b16 %v495
      %v596 = vunpack.c.l.b16 %v496
      %v597 = vunpack.c.l.b16 %v497
      %v598 = vunpack.c.l.b16 %v498
      %v599 = vunpack.c.l.b16 %v499
      %v600 = vunpack.c.l.b16 %v500
      %v601 = vunpack.c.l.b16 %v501
      %v602 = vunpack.c.l.b16 %v502
      %v603 = vunpack.c.l.b16 %v503
      %v604 = vunpack.c.l.b16 %v504
      %v605 = vunpack.c.l.b16 %v505
      %v606 = vunpack.c.l.b16 %v506
      %v607 = vunpack.c.l.b16 %v507
      %v608 = vunpack.c.l.b16 %v508
      %v609 = vunpack.c.l.b16 %v509
      %v610 = vunpack.c.l.b16 %v510
      %v611 = vunpack.c.l.b16 %v511
      %v612 = vunpack.c.l.b16 %v512
      %v613 = vunpack.c.l.b16 %v513
      %v614 = vunpack.c.l.b16 %v514
      %v615 = vunpack.c.l.b16 %v515
      %v616 = vunpack.c.l.b16 %v516
      %v617 = vunpack.c.l.b16 %v517
      %v618 = vunpack.c.l.b16 %v518
      %v619 = vunpack.c.l.b16 %v519
      %v620 = vunpack.c.l.b16 %v520
      %v621 = vunpack.c.l.b16 %v521
      %v622 = vunpack.c.l.b16 %v522
      %v623 = vunpack.c.l.b16 %v523
      %v624 = vunpack.c.l.b16 %v524
      %v625 = vunpack.c.l.b16 %v525
      %v626 = vunpack.c.l.b16 %v526
      %v627 = vunpack.c.l.b16 %v527
      %v628 = vunpack.c.l.b16 %v528
      %v629 = vunpack.c.l.b16 %v529
      %v630 = vunpack.c.l.b16 %v530
      %v631 = vunpack.c.l.b16 %v531
      %v632 = vunpack.c.l.b16 %v532
      %v633 = vunpack.c.l.b16 %v533
      %v634 = vunpack.c.l.b16 %v534
      %v635 = vunpack.c.l.b16 %v535
      %v636 = vunpack.c.l.b16 %v536
      %v637 = vunpack.c.l.b16 %v537
      %v638 = vpack.c.b16 %v591, %v590
      %v639 = vpack.c.b16 %v593, %v592
      %v640 = vpack.c.b16 %v595, %v594
      %v641 = vpack.c.b16 %v597, %v596
      %v642 = vpack.c.b16 %v599, %v598
      %v643 = vpack.c.b16 %v601, %v600
      %v644 = vpack.c.b16 %v603, %v602
      %v645 = vpack.c.b16 %v605, %v604
      %v646 = vpack.c.b16 %v607, %v606
      %v647 = vpack.c.b16 %v609, %v608
      %v648 = vpack.c.b16 %v611, %v610
      %v649 = vpack.c.b16 %v613, %v612
      %v650 = vpack.c.b16 %v615, %v614
      %v651 = vpack.c.b16 %v617, %v616
      %v652 = vpack.c.b16 %v619, %v618
      %v653 = vpack.c.b16 %v621, %v620
      %v654 = vpack.c.b16 %v623, %v622
      %v655 = vpack.c.b16 %v625, %v624
      %v656 = vpack.c.b16 %v627, %v626
      %v657 = vpack.c.b16 %v629, %v628
      %v658 = vpack.c.b16 %v631, %v630
      %v659 = vpack.c.b16 %v633, %v632
      %v660 = vpack.c.b16 %v635, %v634
      %v661 = vpack.c.b16 %v637, %v636
      %686 = vmatprep.subr.bf16.mxu0 0
      %687 = vmatpush1.bf16.msra.mxu0 %v638
      %688 = vmatprep.subr.bf16.mxu0 0
      %689 = vmatpush1.bf16.msra.mxu0 %v639
      %690 = vmatprep.subr.bf16.mxu0 0
      %691 = vmatpush1.bf16.msra.mxu0 %v640
      %692 = vmatprep.subr.bf16.mxu0 0
      %693 = vmatpush1.bf16.msra.mxu0 %v641
      %694 = vmatprep.subr.bf16.mxu0 0
      %695 = vmatpush1.bf16.msra.mxu0 %v642
      %696 = vmatprep.subr.bf16.mxu0 0
      %697 = vmatpush1.bf16.msra.mxu0 %v643
      %698 = vmatprep.subr.bf16.mxu0 0
      %699 = vmatpush1.bf16.msra.mxu0 %v644
      %700 = vmatprep.subr.bf16.mxu0 0
      %701 = vmatpush1.bf16.msra.mxu0 %v645
      %702 = vmatprep.subr.bf16.mxu0 0
      %703 = vmatpush1.bf16.msra.mxu0 %v646
      %704 = vmatprep.subr.bf16.mxu0 0
      %705 = vmatpush1.bf16.msra.mxu0 %v647
      %706 = vmatprep.subr.bf16.mxu0 0
      %707 = vmatpush1.bf16.msra.mxu0 %v648
      %708 = vmatprep.subr.bf16.mxu0 0
      %709 = vmatpush1.bf16.msra.mxu0 %v649
      %710 = vmatprep.subr.bf16.mxu0 0
      %711 = vmatpush1.bf16.msra.mxu0 %v650
      %712 = vmatprep.subr.bf16.mxu0 0
      %713 = vmatpush1.bf16.msra.mxu0 %v651
      %714 = vmatprep.subr.bf16.mxu0 0
      %715 = vmatpush1.bf16.msra.mxu0 %v652
      %716 = vmatprep.subr.bf16.mxu0 0
      %717 = vmatpush1.bf16.msra.mxu0 %v653
      %718 = vmatprep.mubr.bf16.mxu0 %v475
      %719 = vmatmul.mubr.bf16.gmra.mrb[0].mxu0 %v484
      %v720 = vpop.f32.mrb[0].mxu0
      %v721 = vadd.f32 %v541, %v720
      %v722 = vpop.f32.mrb[0].mxu0
      %v723 = vpop.f32.mrb[0].mxu0
      %v724 = vadd.f32 %v541, %v723
      %v725 = vpop.f32.mrb[0].mxu0
      %726 = vdwg.mxu0
      %727 = vmatprep.subr.bf16.mxu0 0
      %728 = vmatpush1.bf16.msra.mxu0 %v654
      %729 = vmatprep.subr.bf16.mxu0 0
      %730 = vmatpush1.bf16.msra.mxu0 %v655
      %731 = vmatprep.subr.bf16.mxu0 0
      %732 = vmatpush1.bf16.msra.mxu0 %v656
      %733 = vmatprep.subr.bf16.mxu0 0
      %734 = vmatpush1.bf16.msra.mxu0 %v657
      %735 = vmatprep.subr.bf16.mxu0 0
      %736 = vmatpush1.bf16.msra.mxu0 %v658
      %737 = vmatprep.subr.bf16.mxu0 0
      %738 = vmatpush1.bf16.msra.mxu0 %v659
      %739 = vmatprep.subr.bf16.mxu0 0
      %740 = vmatpush1.bf16.msra.mxu0 %v660
      %741 = vmatprep.subr.bf16.mxu0 0
      %742 = vmatpush1.bf16.msra.mxu0 %v661
      %743 = vmatprep.subr.bf16.mxu0 0
      %744 = vmatpush1.bf16.msra.mxu0 0
      %745 = vmatprep.subr.bf16.mxu0 0
      %746 = vmatpush1.bf16.msra.mxu0 0
      %747 = vmatprep.subr.bf16.mxu0 0
      %748 = vmatpush1.bf16.msra.mxu0 0
      %749 = vmatprep.subr.bf16.mxu0 0
      %750 = vmatpush1.bf16.msra.mxu0 0
      %751 = vmatprep.subr.bf16.mxu0 0
      %752 = vmatpush1.bf16.msra.mxu0 0
      %753 = vmatprep.subr.bf16.mxu0 0
      %754 = vmatpush1.bf16.msra.mxu0 0
      %755 = vmatprep.subr.bf16.mxu0 0
      %756 = vmatpush1.bf16.msra.mxu0 0
      %757 = vmatprep.subr.bf16.mxu0 0
      %758 = vmatpush1.bf16.msra.mxu0 0
      %759 = vmatprep.mubr.bf16.mxu0 0
      %760 = vmatmul.mubr.bf16.gmra.mrb[0].mxu0 %v488
      %v761 = vpop.f32.mrb[0].mxu0
      %v762 = vadd.f32 %v721, %v761
      %v763 = vpop.f32.mrb[0].mxu0
      %v764 = vpop.f32.mrb[0].mxu0
      %v765 = vadd.f32 %v724, %v764
      %v766 = vpop.f32.mrb[0].mxu0
      %767 = vdwg.mxu0
      %v768 = vadd.f32 %v172, %v762
      %v769 = vadd.f32 %v173, %v765
      %770 = vst [vmem:[%s170] sm:$0xff] %v768
      %771 = vst [vmem:[%s170 + $0x8] sm:$0xff] %v769
      %p772 = scmp.lt.s32.totalorder %s14, 1
      %s773 = scalar_select %p772, %s14, 1
      %s774 = smul.addr %s773, 2
      %s775 = smul.addr %s774, 8
      %s776 = scalar_lea.vmem %s3, %s775
      // Predicated region
      $region33: #{resblk_spatial_forward.1} parent=31 // pred_check
        %p777 = pneg %p100
      $region34: #{resblk_spatial_forward.1} parent=31 // pred_check_branch
        %779 = sbr.rel (%p777) target = $region36
      $region35: #{resblk_spatial_forward.1} parent=31 // pred_region
        _
      $region36: #{resblk_spatial_forward.1} parent=31 // pred_fallthru
        _
    $region32: #{resblk_spatial_forward.1} parent=5 // pred_fallthru
      _
    %p780 = scmp.le.s32.totalorder 2, %s9
    // Predicated region
    $region37: #{resblk_spatial_forward.1} parent=5 // pred_check
      %p781 = pneg %p780
    $region38: #{resblk_spatial_forward.1} parent=5 // pred_check_branch
      %783 = sbr.rel (%p781) target = $region40
    $region39: #{resblk_spatial_forward.1} parent=5 // pred_region
      %s784 = ssub.s32 %s9, 2
      // Predicated region
      $region41: #{resblk_spatial_forward.1} parent=39 // pred_check
        %p785 = pneg %p106
      $region42: #{resblk_spatial_forward.1} parent=39 // pred_check_branch
        %787 = sbr.rel (%p785) target = $region44
      $region43: #{resblk_spatial_forward.1} parent=39 // pred_region
        %p788 = scmp.lt.s32.totalorder %s15, 1
        %s789 = scalar_select %p788, %s15, 1
        %s790 = smul.addr %s789, 2
        %s791 = smul.addr %s790, 8
        %s792 = scalar_lea.vmem %s3, %s791
      $region44: #{resblk_spatial_forward.1} parent=39 // pred_fallthru
        _
    $region40: #{resblk_spatial_forward.1} parent=5 // pred_fallthru
      _
  $region6: #{resblk_spatial_forward.1} parent=0 // loop_footer
    %s13 = sadd.s32 1, %s9
  $region7: #{resblk_spatial_forward.1} parent=0 // loop_footer_branch
    %8 = sbr.rel target = $region3
  $region8: #{resblk_spatial_forward.1} parent=0 // loop_exit
    _

</llo_original>
